<compile_context>
chip_gen: v7x
topology: tpu7x:2x2x1
jax: 0.10.0
libtpu: 0.0.40
codegen_flags: <defaults>
</compile_context>

<pallas_src>
import functools

import jax
import jax.numpy as jnp
from jax.experimental import pallas as pl
from jax.experimental.pallas import tpu as pltpu


def _focal_loss_kernel(logits_ref, labels_ref, sum_ref, cnt_ref, *,
                       gamma, ignore_lb, use_bf16_exp):
    x = logits_ref[0].astype(jnp.float32)          # (C, T)
    labels = labels_ref[0]                         # (1, T) int32
    C, _ = x.shape

    # Numerically-stable log-softmax pieces over the class (sublane) axis.
    m = jnp.max(x, axis=0, keepdims=True)          # (1, T)
    if use_bf16_exp:
        # TODO(synk): only enable on v6e/v7x when a bundle dump shows the EUP
        # slot saturated AND the accuracy budget allows (~3 fewer digits).
        e = jnp.exp((x - m).astype(jnp.bfloat16)).astype(jnp.float32)
    else:
        e = jnp.exp(x - m)                         # (C, T) - only user of shift
    log_denom = jnp.log(jnp.sum(e, axis=0, keepdims=True))   # (1, T)

    # Gather the label class' logit (one-hot select over C) before any focal
    # math, so pow/exp below are O(T), not O(C*T).  The iota is only (C, 1).
    cls = jax.lax.broadcasted_iota(jnp.int32, (C, 1), 0)
    x_lab = jnp.sum(jnp.where(cls == labels, x, 0.0),
                    axis=0, keepdims=True)         # (1, T)

    logp_lab = (x_lab - m) - log_denom             # log_softmax at label class
    p_lab = jnp.exp(logp_lab)                      # softmax at label class

    one_minus_p = jnp.maximum(1.0 - p_lab, 0.0)
    ig = int(round(gamma))
    if abs(gamma - ig) < 1e-12 and 0 <= ig <= 16:
        # Static integer gamma (gamma=2 is the common case): plain VPU multiplies.
        focal = jnp.ones_like(one_minus_p)
        for _ in range(ig):
            focal = focal * one_minus_p
    else:
        focal = jnp.power(one_minus_p, gamma)      # only on a (1, T) row

    picked = focal * logp_lab                      # (1, T)
    valid = labels != ignore_lb                    # padded tail lanes -> False

    psum = jnp.sum(jnp.where(valid, -picked, 0.0))
    pcnt = jnp.sum(valid.astype(jnp.float32))

    # Per-tile partial scalars, written lane-dense; wrapper reads lane 0.
    sum_ref[0] = jnp.broadcast_to(psum, (1, 128))
    cnt_ref[0] = jnp.broadcast_to(pcnt, (1, 128))


def _vmem_budget():
    """Generation-aware (budget_for_tiling, vmem_limit_bytes)."""
    vmem_cap = None
    try:
        info = pltpu.get_tpu_info()
        vmem_cap = getattr(info, "vmem_capacity_bytes", None)
    except Exception:
        vmem_cap = None
    if vmem_cap is not None and vmem_cap >= (96 << 20):
        # v5e / v6e: 128 MiB physical VMEM -> amortize DMA/step cost hard.
        return 32 << 20, 64 << 20
    # v7x (64 MiB per TensorCore) or unknown: stay conservative.
    return 16 << 20, 32 << 20


def softmax_focal_loss(logits, labels, *, gamma, ignore_lb=255, tile_pix=None,
                       use_bf16_exp=False):
    """logits: (N, C, H, W) float, labels: (N, H, W) int. Returns scalar f32 loss."""
    N, C, H, W = logits.shape
    n_pix = H * W

    # Native memory order: reshape only (no transpose, no logits pad).
    x = logits.reshape(N, C, n_pix)
    lab = labels.reshape(N, 1, n_pix).astype(jnp.int32)

    budget, vmem_limit = _vmem_budget()
    itemsize = jnp.dtype(logits.dtype).itemsize
    # Bytes per pixel lane resident in VMEM:
    #   2x double-buffered logits block + 2x labels block (int32)
    #   + ~3 (C, T) f32 in-kernel temps (x in f32, exp(x-m), one-hot select).
    bytes_per_lane = 2 * C * itemsize + 2 * 4 + 3 * C * 4

    if tile_pix is None:
        tile_pix = budget // bytes_per_lane
    if n_pix <= tile_pix:
        tile_pix = n_pix                     # full extent (always legal)
    else:
        tile_pix = max(128, (tile_pix // 128) * 128)
    num_pix_tiles = pl.cdiv(n_pix, tile_pix)

    # Pad only the (cheap) labels to a tile multiple with ignore_lb; the OOB
    # logits lanes of the ragged last block are masked by that label.
    n_pad = num_pix_tiles * tile_pix
    if n_pad != n_pix:
        lab = jnp.pad(lab, ((0, 0), (0, 0), (0, n_pad - n_pix)),
                      constant_values=ignore_lb)

    kernel = functools.partial(
        _focal_loss_kernel, gamma=float(gamma), ignore_lb=int(ignore_lb),
        use_bf16_exp=bool(use_bf16_exp))

    n_steps = N * num_pix_tiles
    part_sum, part_cnt = pl.pallas_call(
        kernel,
        out_shape=(
            jax.ShapeDtypeStruct((n_steps, 1, 128), jnp.float32),
            jax.ShapeDtypeStruct((n_steps, 1, 128), jnp.float32),
        ),
        grid_spec=pltpu.PrefetchScalarGridSpec(
            num_scalar_prefetch=0,
            grid=(N, num_pix_tiles),
            in_specs=[
                pl.BlockSpec((1, C, tile_pix), lambda n, j: (n, 0, j)),
                pl.BlockSpec((1, 1, tile_pix), lambda n, j: (n, 0, j)),
            ],
            out_specs=[
                pl.BlockSpec((1, 1, 128),
                             lambda n, j: (n * num_pix_tiles + j, 0, 0)),
                pl.BlockSpec((1, 1, 128),
                             lambda n, j: (n * num_pix_tiles + j, 0, 0)),
            ],
        ),
        compiler_params=pltpu.CompilerParams(
            dimension_semantics=("parallel", "parallel"),
            vmem_limit_bytes=vmem_limit,
        ),
    )(x, lab)

    # NLLLoss(reduction='mean'): sum over valid pixels / number of valid pixels.
    # Note: if every label == ignore_lb this is 0/0 = NaN, matching PyTorch.
    loss_sum = jnp.sum(part_sum[:, 0, 0])
    loss_cnt = jnp.sum(part_cnt[:, 0, 0])
    return (loss_sum / loss_cnt).astype(jnp.float32)


def _reference_loss(logits, labels, gamma, ignore_lb=255):
    """Pure-JAX reference matching the PyTorch module semantics."""
    scores = jax.nn.softmax(logits, axis=1)
    factor = jnp.power(1.0 - scores, gamma)
    log_score = jax.nn.log_softmax(logits, axis=1)
    weighted = factor * log_score                            # (N, C, H, W)
    labels_safe = jnp.where(labels == ignore_lb, 0, labels)
    picked = jnp.take_along_axis(weighted, labels_safe[:, None, :, :], axis=1)[:, 0]
    valid = labels != ignore_lb
    num = jnp.sum(jnp.where(valid, -picked, 0.0))
    den = jnp.sum(valid.astype(jnp.float32))
    return num / den


if __name__ == "__main__":
    key = jax.random.PRNGKey(0)
    k_logits, k_labels, k_ignore, k_logits2 = jax.random.split(key, 4)

    gamma = 2.0
    ignore_lb = 255

    # Case 1: canonical small shape with some ignore_index labels.
    N, C, H, W = 2, 4, 16, 16
    logits = jax.random.normal(k_logits, (N, C, H, W), dtype=jnp.float32)
    labels = jax.random.randint(k_labels, (N, H, W), 0, C, dtype=jnp.int32)
    ignore_mask = jax.random.uniform(k_ignore, (N, H, W)) < 0.1
    labels = jnp.where(ignore_mask, ignore_lb, labels)

    loss = softmax_focal_loss(logits, labels, gamma=gamma, ignore_lb=ignore_lb)
    loss = jax.block_until_ready(loss)
    ref = _reference_loss(logits, labels, gamma, ignore_lb)
    assert jnp.allclose(loss, ref, rtol=1e-4, atol=1e-5), (loss, ref)

    # Case 2: H*W not a multiple of the pixel tile -> exercises the label-pad
    # ragged-tail path (logits stay unpadded, garbage lanes masked by ignore_lb).
    N2, C2, H2, W2 = 2, 4, 15, 20
    logits2 = jax.random.normal(k_logits2, (N2, C2, H2, W2), dtype=jnp.float32)
    labels2 = jax.random.randint(k_labels, (N2, H2, W2), 0, C2, dtype=jnp.int32)
    loss2 = softmax_focal_loss(logits2, labels2, gamma=gamma, ignore_lb=ignore_lb,
                               tile_pix=128)
    loss2 = jax.block_until_ready(loss2)
    ref2 = _reference_loss(logits2, labels2, gamma, ignore_lb)
    assert jnp.allclose(loss2, ref2, rtol=1e-4, atol=1e-5), (loss2, ref2)

    print("KERNEL_OK")
</pallas_src>

<mosaic_0001>
module attributes {stable_mosaic.version = 11 : i64} {
  func.func @_focal_loss_kernel(%arg0: i32, %arg1: i32, %arg2: memref<1x4x256xf32, #tpu.memory_space<vmem>>, %arg3: memref<1x1x256xi32, #tpu.memory_space<vmem>>, %arg4: memref<1x1x128xf32, #tpu.memory_space<vmem>>, %arg5: memref<1x1x128xf32, #tpu.memory_space<vmem>>) attributes {dimension_semantics = [#tpu.dimension_semantics<parallel>, #tpu.dimension_semantics<parallel>], iteration_bounds = array<i64: 2, 1>, scalar_prefetch = 0 : i64, scratch_operands = 0 : i64, tpu.core_type = #tpu.core_type<tc>, window_params = [{transform_indices = @transform_0, window_bounds = array<i64: 1, 4, 256>}, {transform_indices = @transform_1, window_bounds = array<i64: 1, 1, 256>}, {transform_indices = @transform_2, window_bounds = array<i64: 1, 1, 128>}, {transform_indices = @transform_3, window_bounds = array<i64: 1, 1, 128>}]} {
    %c0 = arith.constant 0 : index
    %c0_0 = arith.constant 0 : index
    %c0_1 = arith.constant 0 : index
    %0 = vector.load %arg2[%c0, %c0_0, %c0_1] : memref<1x4x256xf32, #tpu.memory_space<vmem>>, vector<1x4x256xf32>
    %1 = vector.shape_cast %0 : vector<1x4x256xf32> to vector<4x256xf32>
    %c0_2 = arith.constant 0 : index
    %c0_3 = arith.constant 0 : index
    %c0_4 = arith.constant 0 : index
    %2 = vector.load %arg3[%c0_2, %c0_3, %c0_4] : memref<1x1x256xi32, #tpu.memory_space<vmem>>, vector<1x1x256xi32>
    %3 = vector.shape_cast %2 : vector<1x1x256xi32> to vector<1x256xi32>
    %cst = arith.constant dense<0xFF800000> : vector<256xf32>
    %4 = vector.multi_reduction <maximumf>, %1, %cst [0] : vector<4x256xf32> to vector<256xf32>
    %5 = vector.shape_cast %4 : vector<256xf32> to vector<1x256xf32>
    %6 = vector.broadcast %5 : vector<1x256xf32> to vector<4x256xf32>
    %7 = arith.subf %1, %6 : vector<4x256xf32>
    %8 = math.exp %7 : vector<4x256xf32>
    %cst_5 = arith.constant dense<0.000000e+00> : vector<256xf32>
    %9 = vector.multi_reduction <add>, %8, %cst_5 [0] : vector<4x256xf32> to vector<256xf32>
    %10 = vector.shape_cast %9 : vector<256xf32> to vector<1x256xf32>
    %11 = math.log %10 : vector<1x256xf32>
    %12 = tpu.iota {dimensions = array<i32: 0>} : vector<4x1xi32>
    %13 = vector.broadcast %12 : vector<4x1xi32> to vector<4x256xi32>
    %14 = vector.broadcast %3 : vector<1x256xi32> to vector<4x256xi32>
    %15 = arith.cmpi eq, %13, %14 : vector<4x256xi32>
    %cst_6 = arith.constant 0.000000e+00 : f32
    %16 = vector.broadcast %cst_6 : f32 to vector<4x256xf32>
    %17 = arith.select %15, %1, %16 : vector<4x256xi1>, vector<4x256xf32>
    %cst_7 = arith.constant dense<0.000000e+00> : vector<256xf32>
    %18 = vector.multi_reduction <add>, %17, %cst_7 [0] : vector<4x256xf32> to vector<256xf32>
    %19 = vector.shape_cast %18 : vector<256xf32> to vector<1x256xf32>
    %20 = arith.subf %19, %5 : vector<1x256xf32>
    %21 = arith.subf %20, %11 : vector<1x256xf32>
    %22 = math.exp %21 : vector<1x256xf32>
    %cst_8 = arith.constant 1.000000e+00 : f32
    %23 = vector.broadcast %cst_8 : f32 to vector<1x256xf32>
    %24 = arith.subf %23, %22 : vector<1x256xf32>
    %cst_9 = arith.constant 0.000000e+00 : f32
    %25 = vector.broadcast %cst_9 : f32 to vector<1x256xf32>
    %26 = arith.maximumf %24, %25 : vector<1x256xf32>
    %cst_10 = arith.constant 1.000000e+00 : f32
    %27 = vector.broadcast %cst_10 : f32 to vector<1x256xf32>
    %28 = arith.mulf %27, %26 : vector<1x256xf32>
    %29 = arith.mulf %28, %26 : vector<1x256xf32>
    %30 = arith.mulf %29, %21 : vector<1x256xf32>
    %c255_i32 = arith.constant 255 : i32
    %31 = vector.broadcast %c255_i32 : i32 to vector<1x256xi32>
    %32 = arith.cmpi ne, %3, %31 : vector<1x256xi32>
    %cst_11 = arith.constant 0.000000e+00 : f32
    %33 = vector.broadcast %cst_11 : f32 to vector<1x256xf32>
    %34 = arith.subf %33, %30 : vector<1x256xf32>
    %cst_12 = arith.constant 0.000000e+00 : f32
    %35 = vector.broadcast %cst_12 : f32 to vector<1x256xf32>
    %36 = arith.select %32, %34, %35 : vector<1x256xi1>, vector<1x256xf32>
    %37 = vector.shape_cast %36 : vector<1x256xf32> to vector<1x1x256xf32>
    %cst_13 = arith.constant dense<0.000000e+00> : vector<1xf32>
    %38 = vector.multi_reduction <add>, %37, %cst_13 [1, 2] : vector<1x1x256xf32> to vector<1xf32>
    %39 = vector.shape_cast %38 : vector<1xf32> to vector<1x1x1xf32>
    %40 = vector.extract %39[0, 0, 0] : f32 from vector<1x1x1xf32>
    %41 = arith.extui %32 : vector<1x256xi1> to vector<1x256xi32>
    %42 = arith.sitofp %41 : vector<1x256xi32> to vector<1x256xf32>
    %43 = vector.shape_cast %42 : vector<1x256xf32> to vector<1x1x256xf32>
    %cst_14 = arith.constant dense<0.000000e+00> : vector<1xf32>
    %44 = vector.multi_reduction <add>, %43, %cst_14 [1, 2] : vector<1x1x256xf32> to vector<1xf32>
    %45 = vector.shape_cast %44 : vector<1xf32> to vector<1x1x1xf32>
    %46 = vector.extract %45[0, 0, 0] : f32 from vector<1x1x1xf32>
    %47 = vector.broadcast %40 : f32 to vector<1x128xf32>
    %c0_15 = arith.constant 0 : index
    %c0_16 = arith.constant 0 : index
    %c0_17 = arith.constant 0 : index
    %48 = vector.load %arg4[%c0_15, %c0_16, %c0_17] : memref<1x1x128xf32, #tpu.memory_space<vmem>>, vector<1x1x128xf32>
    %49 = vector.shape_cast %48 : vector<1x1x128xf32> to vector<1x128xf32>
    %50 = vector.shape_cast %47 : vector<1x128xf32> to vector<1x1x128xf32>
    tpu.vector_store %arg4[%c0_15, %c0_16, %c0_17], %50 {strides = array<i32>} : memref<1x1x128xf32, #tpu.memory_space<vmem>>, vector<1x1x128xf32>,
    %51 = vector.broadcast %46 : f32 to vector<1x128xf32>
    %c0_18 = arith.constant 0 : index
    %c0_19 = arith.constant 0 : index
    %c0_20 = arith.constant 0 : index
    %52 = vector.load %arg5[%c0_18, %c0_19, %c0_20] : memref<1x1x128xf32, #tpu.memory_space<vmem>>, vector<1x1x128xf32>
    %53 = vector.shape_cast %52 : vector<1x1x128xf32> to vector<1x128xf32>
    %54 = vector.shape_cast %51 : vector<1x128xf32> to vector<1x1x128xf32>
    tpu.vector_store %arg5[%c0_18, %c0_19, %c0_20], %54 {strides = array<i32>} : memref<1x1x128xf32, #tpu.memory_space<vmem>>, vector<1x1x128xf32>,
    return
  }
  func.func @transform_0(%arg0: i32, %arg1: i32) -> (i32, i32, i32) {
    %c0_i32 = arith.constant 0 : i32
    %c0_i32_0 = arith.constant 0 : i32
    return %arg0, %c0_i32, %arg1 : i32, i32, i32
  }
  func.func @transform_1(%arg0: i32, %arg1: i32) -> (i32, i32, i32) {
    %c0_i32 = arith.constant 0 : i32
    %c0_i32_0 = arith.constant 0 : i32
    return %arg0, %c0_i32, %arg1 : i32, i32, i32
  }
  func.func @transform_2(%arg0: i32, %arg1: i32) -> (i32, i32, i32) {
    %c1_i32 = arith.constant 1 : i32
    %0 = arith.muli %arg0, %c1_i32 : i32
    %1 = arith.addi %0, %arg1 : i32
    %c0_i32 = arith.constant 0 : i32
    %c0_i32_0 = arith.constant 0 : i32
    %c0_i32_1 = arith.constant 0 : i32
    return %1, %c0_i32, %c0_i32_0 : i32, i32, i32
  }
  func.func @transform_3(%arg0: i32, %arg1: i32) -> (i32, i32, i32) {
    %c1_i32 = arith.constant 1 : i32
    %0 = arith.muli %arg0, %c1_i32 : i32
    %1 = arith.addi %0, %arg1 : i32
    %c0_i32 = arith.constant 0 : i32
    %c0_i32_0 = arith.constant 0 : i32
    %c0_i32_1 = arith.constant 0 : i32
    return %1, %c0_i32, %c0_i32_0 : i32, i32, i32
  }
}

</mosaic_0001>

<llo_original>
// kernel: tpu_custom_call.1
$region0: #{tpu_custom_call.1}
  #allocation0 [shape = 'u32[]', space=smem, size = 0x4, offset = 0x4, fixed_abs, tag = 'smem constant byte address 0x4 - core index']
  #allocation1 [shape = 'u32[144,128]{1,0:T(1,128)}', space=vmem, size = 0x12000, scoped, tag = 'internal scratch']
  %s0 = inlined_call_operand.hbm [shape: f32[2,4,256], index: 0, kind: input, shape index: {}]
  %s1 = inlined_call_operand.hbm [shape: s32[2,1,256], index: 1, kind: input, shape index: {}]
  %s2 = inlined_call_operand.hbm [shape: f32[2,1,128], index: 2, kind: output, shape index: {0}]
  %s3 = inlined_call_operand.hbm [shape: f32[2,1,128], index: 3, kind: output, shape index: {1}]
  %4 = xla_tuple %s2, %s3
  %s5 = sld [smem:[#allocation0]]
  $region57: #{tpu_custom_call.1} parent=0
    _
  %s7 = ssub.s32 1, %s5
  %s8 = scalar_select 0, %s7, %s5
  $region1: #{tpu_custom_call.1} parent=0
    #allocation2 [shape = 'u8[8192]{0}', space=vmem, size = 0x2000, scoped, tag = 'input window, operand 0']
    #allocation3 [shape = 's32[2]{0}', space=sflag, size = 0x8, scoped, tag = 'scoped memory for tpu_custom_call.1']
    #allocation4 [shape = 's32[2]{0}', space=sflag, size = 0x8, scoped, tag = 'scoped memory for tpu_custom_call.1']
    #allocation5 [shape = 'u8[2048]{0}', space=vmem, size = 0x800, scoped, tag = 'input window, operand 1']
    #allocation6 [shape = 's32[2]{0}', space=sflag, size = 0x8, scoped, tag = 'scoped memory for tpu_custom_call.1']
    #allocation7 [shape = 'u8[1024]{0}', space=vmem, size = 0x400, scoped, tag = 'output window, operand 0']
    #allocation8 [shape = 'u8[1024]{0}', space=vmem, size = 0x400, scoped, tag = 'output window, operand 1']
    #allocation9 [shape = 's32[2]{0}', space=sflag, size = 0x8, scoped, tag = 'scoped memory for tpu_custom_call.1']
    %9 = vsyncpa [#allocation3], 0
    %s10 = scalar_lea.sflag [#allocation3], 1
    %11 = vsyncpa %s10, 0
    %12 = vsyncpa [#allocation6], 0
    %s13 = scalar_lea.sflag [#allocation6], 1
    %14 = vsyncpa %s13, 0
    %15 = vsyncpa [#allocation4], 0
    %s16 = scalar_lea.sflag [#allocation4], 1
    %17 = vsyncpa %s16, 0
    %18 = vsyncpa [#allocation9], 0
    %s19 = scalar_lea.sflag [#allocation9], 1
    %20 = vsyncpa %s19, 0
    loop: start=0, step=1, limit=4
    $region2: #{tpu_custom_call.1} parent=1 // loop_pre_header
      _
    $region3: #{tpu_custom_call.1} parent=1 // loop_header
      %s22 = sphi 0, %s26
      %p23 = scmp.ge.s32.totalorder %s22, 4
      %s29 = sphi 0, %s41
      %s30 = sphi 0, %s37
      %s31 = sphi 0, %s29
      %s32 = sphi 0, %s30
      %s33 = sphi 0, %s31
      %s34 = sphi 0, %s32
      %s46 = sphi 0, %s48
      %s49 = sphi 0, %s46
      %s50 = sphi 0, %s49
      %s66 = sphi 0, %s50
      %s74 = sphi 0, %s76
      %s77 = sphi 0, %s74
      %s78 = sphi 0, %s77
      %s94 = sphi 0, %s78
      %s102 = sphi 0, %s104
      %s105 = sphi 0, %s102
      %s106 = sphi 0, %s105
      %s122 = sphi 0, %s106
      %s130 = sphi 0, %s132
      %s133 = sphi 0, %s130
      %s134 = sphi 0, %s133
      %s150 = sphi 0, %s134
    $region4: #{tpu_custom_call.1} parent=1 // loop_header_branch
      %25 = sbr.rel (%p23) target = $region8
    $region5: #{tpu_custom_call.1} parent=1 // loop_body
      %s27 = ssub.s32 %s22, 1
      %s28 = ssub.s32 %s22, 2
      %s35 = sadd.s32 1, %s30
      %p36 = scmp.ge.s32.totalorder %s35, 1
      %s37 = scalar_select %p36, 0, %s35
      %s38 = sadd.s32 1, %s29
      %s39 = scalar_select %p36, %s38, %s29
      %p40 = scmp.ge.s32.totalorder %s39, 2
      %s41 = scalar_select %p40, 0, %s39
      %s42 = ssub.s32 %s29, %s41
      %s43 = ssub.s32 %s30, %s37
      %s44 = sor.u32 %s42, %s43
      %p45 = scmp.eq.s32.totalorder %s44, 0
      %s47 = sadd.s32 %s46, 1
      %s48 = scalar_select %p45, %s46, %s47
      %p51 = pneg %p45
      %p52 = scmp.eq.s32.totalorder %s22, 1
      %p53 = por %p51, %p52
      %p54 = scmp.ne.s32.totalorder %s46, %s49
      %p55 = scmp.eq.s32.totalorder %s22, 0
      %p56 = por %p54, %p55
      %p57 = scmp.ne.s32.totalorder %s46, %s49
      %p58 = scmp.eq.s32.totalorder %s27, 1
      %p59 = por %p57, %p58
      %p60 = scmp.ne.s32.totalorder %s49, %s50
      %p61 = scmp.eq.s32.totalorder %s27, 0
      %p62 = por %p60, %p61
      %p63 = scmp.ne.s32.totalorder %s49, %s50
      %p64 = scmp.eq.s32.totalorder %s28, 1
      %p65 = por %p63, %p64
      %p67 = scmp.ne.s32.totalorder %s50, %s66
      %p68 = scmp.eq.s32.totalorder %s28, 0
      %p69 = por %p67, %p68
      %s70 = ssub.s32 %s29, %s41
      %s71 = ssub.s32 %s30, %s37
      %s72 = sor.u32 %s70, %s71
      %p73 = scmp.eq.s32.totalorder %s72, 0
      %s75 = sadd.s32 %s74, 1
      %s76 = scalar_select %p73, %s74, %s75
      %p79 = pneg %p73
      %p80 = scmp.eq.s32.totalorder %s22, 1
      %p81 = por %p79, %p80
      %p82 = scmp.ne.s32.totalorder %s74, %s77
      %p83 = scmp.eq.s32.totalorder %s22, 0
      %p84 = por %p82, %p83
      %p85 = scmp.ne.s32.totalorder %s74, %s77
      %p86 = scmp.eq.s32.totalorder %s27, 1
      %p87 = por %p85, %p86
      %p88 = scmp.ne.s32.totalorder %s77, %s78
      %p89 = scmp.eq.s32.totalorder %s27, 0
      %p90 = por %p88, %p89
      %p91 = scmp.ne.s32.totalorder %s77, %s78
      %p92 = scmp.eq.s32.totalorder %s28, 1
      %p93 = por %p91, %p92
      %p95 = scmp.ne.s32.totalorder %s78, %s94
      %p96 = scmp.eq.s32.totalorder %s28, 0
      %p97 = por %p95, %p96
      %s98 = sadd.s32 %s29, %s30
      %s99 = sadd.s32 %s41, %s37
      %s100 = ssub.s32 %s98, %s99
      %p101 = scmp.eq.s32.totalorder %s100, 0
      %s103 = sadd.s32 %s102, 1
      %s104 = scalar_select %p101, %s102, %s103
      %p107 = pneg %p101
      %p108 = scmp.eq.s32.totalorder %s22, 1
      %p109 = por %p107, %p108
      %p110 = scmp.ne.s32.totalorder %s102, %s105
      %p111 = scmp.eq.s32.totalorder %s22, 0
      %p112 = por %p110, %p111
      %p113 = scmp.ne.s32.totalorder %s102, %s105
      %p114 = scmp.eq.s32.totalorder %s27, 1
      %p115 = por %p113, %p114
      %p116 = scmp.ne.s32.totalorder %s105, %s106
      %p117 = scmp.eq.s32.totalorder %s27, 0
      %p118 = por %p116, %p117
      %p119 = scmp.ne.s32.totalorder %s105, %s106
      %p120 = scmp.eq.s32.totalorder %s28, 1
      %p121 = por %p119, %p120
      %p123 = scmp.ne.s32.totalorder %s106, %s122
      %p124 = scmp.eq.s32.totalorder %s28, 0
      %p125 = por %p123, %p124
      %s126 = sadd.s32 %s29, %s30
      %s127 = sadd.s32 %s41, %s37
      %s128 = ssub.s32 %s126, %s127
      %p129 = scmp.eq.s32.totalorder %s128, 0
      %s131 = sadd.s32 %s130, 1
      %s132 = scalar_select %p129, %s130, %s131
      %p135 = pneg %p129
      %p136 = scmp.eq.s32.totalorder %s22, 1
      %p137 = por %p135, %p136
      %p138 = scmp.ne.s32.totalorder %s130, %s133
      %p139 = scmp.eq.s32.totalorder %s22, 0
      %p140 = por %p138, %p139
      %p141 = scmp.ne.s32.totalorder %s130, %s133
      %p142 = scmp.eq.s32.totalorder %s27, 1
      %p143 = por %p141, %p142
      %p144 = scmp.ne.s32.totalorder %s133, %s134
      %p145 = scmp.eq.s32.totalorder %s27, 0
      %p146 = por %p144, %p145
      %p147 = scmp.ne.s32.totalorder %s133, %s134
      %p148 = scmp.eq.s32.totalorder %s28, 1
      %p149 = por %p147, %p148
      %p151 = scmp.ne.s32.totalorder %s134, %s150
      %p152 = scmp.eq.s32.totalorder %s28, 0
      %p153 = por %p151, %p152
      %p154 = scmp.le.s32.totalorder 1, %s22
      %p155 = scmp.lt.s32.totalorder %s22, 3
      %p156 = pnand %p154, %p155
      %p157 = pneg %p156
      // Predicated region
      $region9: #{tpu_custom_call.1} parent=5 // pred_check
        _
      $region10: #{tpu_custom_call.1} parent=5 // pred_check_branch
        %159 = sbr.rel (%p156) target = $region12
      $region11: #{tpu_custom_call.1} parent=5 // pred_region
        %s160 = ssub.s32 %s22, 1
      $region12: #{tpu_custom_call.1} parent=5 // pred_fallthru
        _
      %p161 = scmp.lt.s32.totalorder %s22, 2
      // Predicated region
      $region13: #{tpu_custom_call.1} parent=5 // pred_check
        %p162 = pneg %p161
      $region14: #{tpu_custom_call.1} parent=5 // pred_check_branch
        %164 = sbr.rel (%p162) target = $region16
      $region15: #{tpu_custom_call.1} parent=5 // pred_region
        // Predicated region
        $region17: #{tpu_custom_call.1} parent=15 // pred_check
          %p165 = pneg %p56
        $region18: #{tpu_custom_call.1} parent=15 // pred_check_branch
          %167 = sbr.rel (%p165) target = $region20
        $region19: #{tpu_custom_call.1} parent=15 // pred_region
          %s168 = sand.u32 %s46, 1
          %s169 = scalar_lea.sflag [#allocation3], %s168
          %s170 = sand.u32 %s46, 1
          %s171 = smul.addr %s170, 8
          %s172 = scalar_lea.vmem [#allocation2], %s171
          %s173 = smul.u32 2, %s30
          %s175 = ssub.s32 128, 128
          %176 = vsyncadd %s169, %s175
          %s177 = smul.addr %s29, 2
          %s178 = sadd.s32 %s173, %s177
          %s179 = smul.addr %s178, 64
          %s180 = scalar_lea.hbm %s0, %s179
          %s182 = sshll.u32 %s172, 4
          %s183 = int_to_ptr.vmem [resolvable:$true] %s182
          %185 = dma.hbm_to_vmem [thread:$0]  %s180, 128, %s183, %s169
        $region20: #{tpu_custom_call.1} parent=15 // pred_fallthru
          _
        // Predicated region
        $region21: #{tpu_custom_call.1} parent=15 // pred_check
          %p186 = pneg %p84
        $region22: #{tpu_custom_call.1} parent=15 // pred_check_branch
          %188 = sbr.rel (%p186) target = $region24
        $region23: #{tpu_custom_call.1} parent=15 // pred_region
          %s189 = sand.u32 %s74, 1
          %s190 = scalar_lea.sflag [#allocation6], %s189
          %s191 = sand.u32 %s74, 1
          %s192 = smul.addr %s191, 2
          %s193 = scalar_lea.vmem [#allocation5], %s192
          %s194 = smul.u32 2, %s30
          %s196 = ssub.s32 32, 32
          %197 = vsyncadd %s190, %s196
          %s198 = smul.addr %s29, 2
          %s199 = sadd.s32 %s194, %s198
          %s200 = smul.addr %s199, 16
          %s201 = scalar_lea.hbm %s1, %s200
          %s203 = sshll.u32 %s193, 4
          %s204 = int_to_ptr.vmem [resolvable:$true] %s203
          %206 = dma.hbm_to_vmem [thread:$0]  %s201, 32, %s204, %s190
        $region24: #{tpu_custom_call.1} parent=15 // pred_fallthru
          _
      $region16: #{tpu_custom_call.1} parent=5 // pred_fallthru
        _
      %p207 = scmp.le.s32.totalorder 1, %s22
      %p208 = scmp.lt.s32.totalorder %s22, 3
      %p209 = pnand %p207, %p208
      %p210 = pneg %p209
      // Predicated region
      $region25: #{tpu_custom_call.1} parent=5 // pred_check
        _
      $region26: #{tpu_custom_call.1} parent=5 // pred_check_branch
        %212 = sbr.rel (%p209) target = $region28
      $region27: #{tpu_custom_call.1} parent=5 // pred_region
        %s213 = ssub.s32 %s22, 1
        %s214 = sand.u32 %s49, 1
        %s215 = scalar_lea.sflag [#allocation3], %s214
        %s216 = sand.u32 %s49, 1
        %s217 = smul.addr %s216, 8
        %s218 = scalar_lea.vmem [#allocation2], %s217
        // Predicated region
        $region29: #{tpu_custom_call.1} parent=27 // pred_check
          %p219 = pneg %p62
        $region30: #{tpu_custom_call.1} parent=27 // pred_check_branch
          %221 = sbr.rel (%p219) target = $region32
        $region31: #{tpu_custom_call.1} parent=27 // pred_region
          %222 = dma.done %s215, 128
        $region32: #{tpu_custom_call.1} parent=27 // pred_fallthru
          _
        %s223 = sand.u32 %s77, 1
        %s224 = scalar_lea.sflag [#allocation6], %s223
        %s225 = sand.u32 %s77, 1
        %s226 = smul.addr %s225, 2
        %s227 = scalar_lea.vmem [#allocation5], %s226
        // Predicated region
        $region33: #{tpu_custom_call.1} parent=27 // pred_check
          %p228 = pneg %p90
        $region34: #{tpu_custom_call.1} parent=27 // pred_check_branch
          %230 = sbr.rel (%p228) target = $region36
        $region35: #{tpu_custom_call.1} parent=27 // pred_region
          %231 = dma.done %s224, 32
        $region36: #{tpu_custom_call.1} parent=27 // pred_fallthru
          _
        %s232 = sand.u32 %s49, 1
        %s233 = scalar_lea.sflag [#allocation3], %s232
        %s234 = sand.u32 %s49, 1
        %s235 = smul.addr %s234, 8
        %s236 = scalar_lea.vmem [#allocation2], %s235
        %p237 = pneg %p62
        %p238 = pneg %p59
        %s239 = sand.u32 %s77, 1
        %s240 = scalar_lea.sflag [#allocation6], %s239
        %s241 = sand.u32 %s77, 1
        %s242 = smul.addr %s241, 2
        %s243 = scalar_lea.vmem [#allocation5], %s242
        %p244 = pneg %p90
        %p245 = pneg %p87
        %p246 = pneg %p118
        %p247 = pneg %p115
        %s248 = sand.u32 %s105, 1
        %s249 = scalar_lea.sflag [#allocation4], %s248
        %s250 = sand.u32 %s105, 1
        %s251 = scalar_lea.vmem [#allocation7], %s250
        %p252 = pneg %p146
        %p253 = pneg %p143
        %s254 = sand.u32 %s133, 1
        %s255 = scalar_lea.sflag [#allocation9], %s254
        %s256 = sand.u32 %s133, 1
        %s257 = scalar_lea.vmem [#allocation8], %s256
        %s258 = smul.u32 2, %s32
        %s259 = smul.u32 2, %s32
        %s260 = sadd.s32 %s31, %s32
        %s261 = sadd.s32 %s31, %s32
        %v262 = vld [vmem:[%s218] sm:$0xff]
        %v263 = vld [vmem:[%s227] sm:$0x3]
        %v265 = vcombine.high %v262, %v262
        %vm267 = vcmask 1043456
        %v268 = vsel %vm267, %v262, -inf
        %v269 = vrot.slane %v268, 4
        %v270 = vmax.f32 %v268, %v269
        %v271 = vrot.slane %v270, 2
        %v272 = vmax.f32 %v270, %v271
        %v273 = vrot.slane %v272, 1
        %v274 = vmax.f32 %v272, %v273
        %v275 = vsel %vm267, %v265, -inf
        %v276 = vrot.slane %v275, 4
        %v277 = vmax.f32 %v275, %v276
        %v278 = vrot.slane %v277, 2
        %v279 = vmax.f32 %v277, %v278
        %v280 = vrot.slane %v279, 1
        %v281 = vmax.f32 %v279, %v280
        %v284 = vcombine.low %v274, %v281
        %v286 = vsub.f32 %v262, %v284
        %v287 = vmul.f32 %v286, 1.442695
        %v288 = vpow.pop %v287
        %v290 = vcombine.high %v288, %v288
        %v292 = vsel %vm267, %v288, 0.0
        %v293 = vrot.slane %v292, 4
        %v294 = vadd.f32 %v292, %v293
        %v295 = vrot.slane %v294, 2
        %v296 = vadd.f32 %v294, %v295
        %v297 = vrot.slane %v296, 1
        %v298 = vadd.f32 %v296, %v297
        %v299 = vsel %vm267, %v290, 0.0
        %v300 = vrot.slane %v299, 4
        %v301 = vadd.f32 %v299, %v300
        %v302 = vrot.slane %v301, 2
        %v303 = vadd.f32 %v301, %v302
        %v304 = vrot.slane %v303, 1
        %v305 = vadd.f32 %v303, %v304
        %v306 = vlog2.pop %v298
        %v307 = vmul.f32 %v306, 0.6931472
        %v308 = vlog2.pop %v305
        %v309 = vmul.f32 %v308, 0.6931472
        %v310 = vlaneseq
        %v311 = vshrl.u32 %v310, 7
        %v312 = vlaneseq
        %v313 = vshrl.u32 %v312, 7
        %v314 = vsub.s32 0, %v313
        %v315 = vrot.slane %v263, %v314
        %v316 = vlaneseq
        %v317 = vshrl.u32 %v316, 7
        %v318 = vsub.s32 1, %v317
        %v319 = vrot.slane %v263, %v318
        %vm320 = vcmp.eq.s32.totalorder %v311, %v315
        %vm321 = vcmp.eq.s32.totalorder %v311, %v319
        %v322 = vsel %vm320, %v262, 0.0
        %v323 = vsel %vm321, %v265, 0.0
        %v324 = vsel %vm267, %v322, 0.0
        %v325 = vrot.slane %v324, 4
        %v326 = vadd.f32 %v324, %v325
        %v327 = vrot.slane %v326, 2
        %v328 = vadd.f32 %v326, %v327
        %v329 = vrot.slane %v328, 1
        %v330 = vadd.f32 %v328, %v329
        %v331 = vsel %vm267, %v323, 0.0
        %v332 = vrot.slane %v331, 4
        %v333 = vadd.f32 %v331, %v332
        %v334 = vrot.slane %v333, 2
        %v335 = vadd.f32 %v333, %v334
        %v336 = vrot.slane %v335, 1
        %v337 = vadd.f32 %v335, %v336
        %v338 = vsub.f32 %v330, %v274
        %v339 = vsub.f32 %v337, %v281
        %v340 = vsub.f32 %v338, %v307
        %v341 = vsub.f32 %v339, %v309
        %v342 = vmul.f32 %v340, 1.442695
        %v343 = vpow.pop %v342
        %v344 = vmul.f32 %v341, 1.442695
        %v345 = vpow.pop %v344
        %v346 = vsub.f32 1.0, %v343
        %v347 = vsub.f32 1.0, %v345
        %v348 = vmax.f32 %v346, 0.0
        %v349 = vmax.f32 %v347, 0.0
        %v350 = vmul.f32 %v348, %v348
        %v351 = vmul.f32 %v349, %v349
        %v352 = vmul.f32 %v350, %v340
        %v353 = vmul.f32 %v351, %v341
        %vm354 = vcmp.ne.s32.totalorder %v263, 255
        %v355 = vsub.f32 0.0, %v352
        %v356 = vsub.f32 0.0, %v353
        %v359 = vcombine.low %v355, %v356
        %v361 = vunpack.c.l.s4 1966171168
        %v362 = vunpack.c.0.s8 %v361
        %v363 = vlaneseq
        %v364 = vshrl.u32 %v363, 7
        %v365 = vsub.s32 %v362, %v364
        %v366 = vrot.slane %v359, %v365
        %v368 = vunpack.c.l.s4 1966171168
        %v369 = vunpack.c.0.s8 %v368
        %v370 = vlaneseq
        %v371 = vshrl.u32 %v370, 7
        %v372 = vsub.s32 %v369, %v371
        %v373 = vrot.slane %v366, %v372
        %v375 = vsel %vm354, %v373, 0.0
        %v377 = vlaneseq
        %v378 = vshrl.u32 %v377, 7
        %v379 = vsub.s32 0, %v378
        %v380 = vrot.slane %v375, %v379
        %v381 = vlaneseq
        %v382 = vshrl.u32 %v381, 7
        %v383 = vsub.s32 1, %v382
        %v384 = vrot.slane %v375, %v383
        %vm387 = vcmask 1040384
        %v388 = vsel %vm387, %v380, 0.0
        %v389 = vsel %vm387, %v384, 0.0
        %v390 = vadd.f32 %v388, %v389
        %391 = vadd.xlane.f32.xlu0 %v390
        %v392 = vpop.xlane.xlu0 %391
        %v393 = vrot.slane %v392, 4
        %v394 = vadd.f32 %v392, %v393
        %v395 = vrot.slane %v394, 2
        %v396 = vadd.f32 %v394, %v395
        %v397 = vrot.slane %v396, 1
        %v398 = vadd.f32 %v396, %v397
        %s399 = vtos %v398
        %v400 = vsel %vm354, 1, 0
        %v401 = vcvt.s32.f32 %v400
        %v403 = vlaneseq
        %v404 = vshrl.u32 %v403, 7
        %v405 = vsub.s32 0, %v404
        %v406 = vrot.slane %v401, %v405
        %v407 = vlaneseq
        %v408 = vshrl.u32 %v407, 7
        %v409 = vsub.s32 1, %v408
        %v410 = vrot.slane %v401, %v409
        %v413 = vsel %vm387, %v406, 0.0
        %v414 = vsel %vm387, %v410, 0.0
        %v415 = vadd.f32 %v413, %v414
        %416 = vadd.xlane.f32.xlu0 %v415
        %v417 = vpop.xlane.xlu0 %416
        %v418 = vrot.slane %v417, 4
        %v419 = vadd.f32 %v417, %v418
        %v420 = vrot.slane %v419, 2
        %v421 = vadd.f32 %v419, %v420
        %v422 = vrot.slane %v421, 1
        %v423 = vadd.f32 %v421, %v422
        %s424 = vtos %v423
        %v425 = vstv %s399
        %426 = vst [vmem:[%s251] sm:$0x1] %v425
        %v427 = vstv %s424
        %428 = vst [vmem:[%s257] sm:$0x1] %v427
        %s429 = sand.u32 %s105, 1
        %s430 = scalar_lea.sflag [#allocation4], %s429
        %s431 = sand.u32 %s105, 1
        %s432 = scalar_lea.vmem [#allocation7], %s431
        %s433 = sand.u32 %s133, 1
        %s434 = scalar_lea.sflag [#allocation9], %s433
        %s435 = sand.u32 %s133, 1
        %s436 = scalar_lea.vmem [#allocation8], %s435
        // Predicated region
        $region37: #{tpu_custom_call.1} parent=27 // pred_check
          %p437 = pneg %p115
        $region38: #{tpu_custom_call.1} parent=27 // pred_check_branch
          %439 = sbr.rel (%p437) target = $region40
        $region39: #{tpu_custom_call.1} parent=27 // pred_region
          %s440 = sadd.s32 %s31, %s32
          %s442 = ssub.s32 16, 16
          %443 = vsyncadd %s430, %s442
          %s444 = smul.addr %s440, 16
          %s445 = scalar_lea.hbm %s2, %s444
          %s447 = sshll.u32 %s432, 4
          %s448 = int_to_ptr.vmem [resolvable:$true] %s447
          %450 = dma.vmem_to_hbm [thread:$0]  %s448, 16, %s445, %s430
        $region40: #{tpu_custom_call.1} parent=27 // pred_fallthru
          _
        // Predicated region
        $region41: #{tpu_custom_call.1} parent=27 // pred_check
          %p451 = pneg %p143
        $region42: #{tpu_custom_call.1} parent=27 // pred_check_branch
          %453 = sbr.rel (%p451) target = $region44
        $region43: #{tpu_custom_call.1} parent=27 // pred_region
          %s454 = sadd.s32 %s31, %s32
          %s456 = ssub.s32 16, 16
          %457 = vsyncadd %s434, %s456
          %s458 = smul.addr %s454, 16
          %s459 = scalar_lea.hbm %s3, %s458
          %s461 = sshll.u32 %s436, 4
          %s462 = int_to_ptr.vmem [resolvable:$true] %s461
          %464 = dma.vmem_to_hbm [thread:$0]  %s462, 16, %s459, %s434
        $region44: #{tpu_custom_call.1} parent=27 // pred_fallthru
          _
      $region28: #{tpu_custom_call.1} parent=5 // pred_fallthru
        _
      %p465 = scmp.le.s32.totalorder 2, %s22
      // Predicated region
      $region45: #{tpu_custom_call.1} parent=5 // pred_check
        %p466 = pneg %p465
      $region46: #{tpu_custom_call.1} parent=5 // pred_check_branch
        %468 = sbr.rel (%p466) target = $region48
      $region47: #{tpu_custom_call.1} parent=5 // pred_region
        %s469 = ssub.s32 %s22, 2
        // Predicated region
        $region49: #{tpu_custom_call.1} parent=47 // pred_check
          %p470 = pneg %p121
        $region50: #{tpu_custom_call.1} parent=47 // pred_check_branch
          %472 = sbr.rel (%p470) target = $region52
        $region51: #{tpu_custom_call.1} parent=47 // pred_region
          %s473 = sand.u32 %s106, 1
          %s474 = scalar_lea.sflag [#allocation4], %s473
          %s475 = sand.u32 %s106, 1
          %s476 = scalar_lea.vmem [#allocation7], %s475
          %477 = dma.done %s474, 16
        $region52: #{tpu_custom_call.1} parent=47 // pred_fallthru
          _
        // Predicated region
        $region53: #{tpu_custom_call.1} parent=47 // pred_check
          %p478 = pneg %p149
        $region54: #{tpu_custom_call.1} parent=47 // pred_check_branch
          %480 = sbr.rel (%p478) target = $region56
        $region55: #{tpu_custom_call.1} parent=47 // pred_region
          %s481 = sand.u32 %s134, 1
          %s482 = scalar_lea.sflag [#allocation9], %s481
          %s483 = sand.u32 %s134, 1
          %s484 = scalar_lea.vmem [#allocation8], %s483
          %485 = dma.done %s482, 16
        $region56: #{tpu_custom_call.1} parent=47 // pred_fallthru
          _
      $region48: #{tpu_custom_call.1} parent=5 // pred_fallthru
        _
    $region6: #{tpu_custom_call.1} parent=1 // loop_footer
      %s26 = sadd.s32 1, %s22
    $region7: #{tpu_custom_call.1} parent=1 // loop_footer_branch
      %21 = sbr.rel target = $region3
    $region8: #{tpu_custom_call.1} parent=1 // loop_exit
      _
    %486 = vsyncpa [#allocation3], 1
    %s487 = scalar_lea.sflag [#allocation3], 1
    %488 = vsyncpa %s487, 1
    %489 = vsyncpa [#allocation6], 1
    %s490 = scalar_lea.sflag [#allocation6], 1
    %491 = vsyncpa %s490, 1
    %492 = vsyncpa [#allocation4], 1
    %s493 = scalar_lea.sflag [#allocation4], 1
    %494 = vsyncpa %s493, 1
    %495 = vsyncpa [#allocation9], 1
    %s496 = scalar_lea.sflag [#allocation9], 1
    %497 = vsyncpa %s496, 1

</llo_original>
